<compile_context>
chip_gen: v7x
topology: tpu7x:2x2x1
jax: 0.10.0
libtpu: 0.0.40
codegen_flags: <defaults>
</compile_context>

<pallas_src>
import jax
import jax.numpy as jnp
from jax import lax
from jax.experimental import pallas as pl
from jax.experimental.pallas import tpu as pltpu

_EPS = 1e-8


# --------------------------------------------------------------------------
# Kernels
# --------------------------------------------------------------------------
def _pixelnorm_nc_hw_kernel(x_ref, o_ref):
    """Block (tile_n, C, tile_hw): normalize over the channel (middle) axis."""
    x = x_ref[...].astype(jnp.float32)
    ms = jnp.mean(x * x, axis=1, keepdims=True)           # mean over channels
    o_ref[...] = (x * lax.rsqrt(ms + _EPS)).astype(o_ref.dtype)


def _pixelnorm_rows_c_kernel(x_ref, o_ref):
    """Block (tile_rows, C): normalize over the last (channel) axis."""
    x = x_ref[...].astype(jnp.float32)
    ms = jnp.mean(x * x, axis=-1, keepdims=True)
    o_ref[...] = (x * lax.rsqrt(ms + _EPS)).astype(o_ref.dtype)


# --------------------------------------------------------------------------
# Tiling helpers
# --------------------------------------------------------------------------
def _round_up(a, b):
    return ((a + b - 1) // b) * b


def _sublane_align(dtype):
    itemsize = jnp.dtype(dtype).itemsize
    if itemsize >= 4:
        return 8
    if itemsize == 2:
        return 16
    return 32                       # int8 / fp8 pack 32 rows per sublane group


def _chip_params():
    """Generation-aware knobs.  Defensive: falls back to conservative v5e/v6e."""
    kind = ""
    try:
        kind = jax.devices()[0].device_kind.lower()
    except Exception:
        pass
    is_v7 = ("v7" in kind) or ("tpu7" in kind) or ("tpu 7" in kind)
    if is_v7:
        # ~3.2 TB/s HBM, 2 TensorCores, 64 MiB physical VMEM per TC.
        return dict(target_block_bytes=4 << 20, min_steps=4,
                    vmem_cap=60 << 20, multi_core=True)
    # v5e / v6e: single TensorCore, 128 MiB physical VMEM.
    return dict(target_block_bytes=2 << 20, min_steps=1,
                vmem_cap=100 << 20, multi_core=False)


def _pick_tile(total, unit, budget_units, min_steps):
    """Tile size along one axis: a multiple of `unit`, or == total (full dim)."""
    if total <= unit:
        return total                               # full dim: always legal
    tile = max(min(budget_units, total // unit), 1) * unit
    if tile >= total:
        tile = total
    # Best-effort shrink to reach min_steps grid steps along this axis.
    while pl.cdiv(total, tile) < min_steps:
        if tile == total:
            new = _round_up(pl.cdiv(total, 2), unit)
            new = min(new, (total // unit) * unit)
        else:
            new = ((tile // 2) // unit) * unit
        new = max(new, unit)
        if new >= tile:
            break
        tile = new
    return tile


def _vmem_limit(block_bytes_padded, chip):
    # in+out double-buffered (4x block) + generous headroom for f32 temps.
    want = 8 * block_bytes_padded + (4 << 20)
    return int(min(max(want, 32 << 20), chip["vmem_cap"]))


# --------------------------------------------------------------------------
# Wrappers
# --------------------------------------------------------------------------
def _pixel_norm_2d(x, chip):
    """(N, C) input: channels on the lane axis, reduce over the last dim."""
    rows, C = x.shape
    itemsize = jnp.dtype(x.dtype).itemsize
    align = _sublane_align(x.dtype)
    c_lane_pad = _round_up(C, 128)                       # lane padding of C
    group_bytes = align * c_lane_pad * itemsize          # bytes per row group

    budget_groups = max(chip["target_block_bytes"] // group_bytes, 1)
    tile_rows = _pick_tile(rows, align, budget_groups, chip["min_steps"])

    # Light even-total nudge so v7x's two TensorCores stay balanced.
    if chip["multi_core"]:
        steps = pl.cdiv(rows, tile_rows)
        if steps > 1 and steps % 2 == 1 and tile_rows != rows:
            alt = _round_up(pl.cdiv(rows, steps + 1), align)
            if 0 < alt < tile_rows and pl.cdiv(rows, alt) % 2 == 0:
                tile_rows = alt

    block_bytes = _round_up(tile_rows, align) * c_lane_pad * itemsize
    grid = (pl.cdiv(rows, tile_rows),)

    return pl.pallas_call(
        _pixelnorm_rows_c_kernel,
        out_shape=jax.ShapeDtypeStruct((rows, C), x.dtype),
        grid=grid,
        in_specs=[pl.BlockSpec((tile_rows, C), lambda i: (i, 0))],
        out_specs=pl.BlockSpec((tile_rows, C), lambda i: (i, 0)),
        compiler_params=pltpu.CompilerParams(
            dimension_semantics=("parallel",),
            vmem_limit_bytes=_vmem_limit(block_bytes, chip)),
    )(x)


def _pixel_norm_3d(x3, chip):
    """(N, C, HW) view: reduce over the middle (channel) axis."""
    N, C, HW = x3.shape
    itemsize = jnp.dtype(x3.dtype).itemsize
    c_pad = _round_up(C, _sublane_align(x3.dtype))       # sublane padding of C
    target = chip["target_block_bytes"]
    min_steps = chip["min_steps"]

    # --- lane tile (last dim): multiple of 128 with a >=512-lane floor for
    #     DMA efficiency, or the full HW extent (always legal). ---
    lane_group_bytes = c_pad * 128 * itemsize            # one 128-lane slab / n
    budget_lane_groups = max(target // lane_group_bytes, 4)   # >= 512 lanes
    tile_hw = _pick_tile(HW, 128, budget_lane_groups, 1)
    hw_pad = _round_up(tile_hw, 128)

    # --- batch tile: grow toward the byte target using PADDED slab bytes ---
    slab_bytes = c_pad * hw_pad * itemsize
    steps_hw = pl.cdiv(HW, tile_hw)
    need_n_steps = pl.cdiv(min_steps, steps_hw)
    budget_n = max(target // slab_bytes, 1)
    tile_n = _pick_tile(N, 1, budget_n, need_n_steps)

    # Still short of the multi-core step target?  Shrink the lane tile too.
    while (pl.cdiv(N, tile_n) * pl.cdiv(HW, tile_hw) < min_steps
           and HW > 128 and tile_hw > 128):
        new_hw = max(min(((tile_hw // 2) // 128) * 128, (HW // 128) * 128), 128)
        if new_hw >= tile_hw:
            break
        tile_hw = new_hw
        hw_pad = _round_up(tile_hw, 128)

    # Light even-total nudge on multi-core chips.
    if chip["multi_core"]:
        total = pl.cdiv(N, tile_n) * pl.cdiv(HW, tile_hw)
        if total > 1 and total % 2 == 1 and tile_n > 1:
            n_steps = pl.cdiv(N, tile_n)
            alt = pl.cdiv(N, n_steps + 1)
            if alt >= 1 and (pl.cdiv(N, alt) * pl.cdiv(HW, tile_hw)) % 2 == 0:
                tile_n = alt

    block_bytes = tile_n * c_pad * _round_up(tile_hw, 128) * itemsize
    grid = (pl.cdiv(N, tile_n), pl.cdiv(HW, tile_hw))

    return pl.pallas_call(
        _pixelnorm_nc_hw_kernel,
        out_shape=jax.ShapeDtypeStruct((N, C, HW), x3.dtype),
        grid=grid,
        in_specs=[pl.BlockSpec((tile_n, C, tile_hw), lambda i, j: (i, 0, j))],
        out_specs=pl.BlockSpec((tile_n, C, tile_hw), lambda i, j: (i, 0, j)),
        compiler_params=pltpu.CompilerParams(
            dimension_semantics=("parallel", "parallel"),
            vmem_limit_bytes=_vmem_limit(block_bytes, chip)),
    )(x3)


def pixel_norm(x):
    """PixelNorm over dim=1, matching PyTorch `PixelNorm.forward`."""
    if x.ndim < 2:
        raise ValueError("pixel_norm expects at least 2 dims (N, C, ...)")
    chip = _chip_params()
    if x.ndim == 2:
        return _pixel_norm_2d(x, chip)

    # (N, C, *spatial): free contiguous reshape, NO transpose, NO extra HBM pass.
    N, C = x.shape[0], x.shape[1]
    HW = 1
    for s in x.shape[2:]:
        HW *= s
    out3 = _pixel_norm_3d(x.reshape(N, C, HW), chip)
    return out3.reshape(x.shape)


# --------------------------------------------------------------------------
# Self-test
# --------------------------------------------------------------------------
if __name__ == "__main__":
    def _ref(a):
        a32 = a.astype(jnp.float32)
        return (a32 / jnp.sqrt(jnp.mean(a32 * a32, axis=1, keepdims=True)
                               + _EPS)).astype(a.dtype)

    key = jax.random.PRNGKey(0)

    # Small NCHW input consistent with the module's forward.
    x = jax.random.normal(key, (2, 4, 16, 16), dtype=jnp.float32)
    out = jax.block_until_ready(pixel_norm(x))
    assert out.shape == x.shape and out.dtype == x.dtype
    assert jnp.allclose(out, _ref(x), atol=1e-5, rtol=1e-5)

    # 2-D (N, latent) path used by the mapping network.
    z = jax.random.normal(jax.random.PRNGKey(1), (8, 512), dtype=jnp.float32)
    out2 = jax.block_until_ready(pixel_norm(z))
    assert jnp.allclose(out2, _ref(z), atol=1e-5, rtol=1e-5)

    # Awkward (non-128 / non-8 divisible) shape exercising the cdiv-grid path.
    w = jax.random.normal(jax.random.PRNGKey(2), (3, 5, 7, 9), dtype=jnp.float32)
    out3 = jax.block_until_ready(pixel_norm(w))
    assert jnp.allclose(out3, _ref(w), atol=1e-5, rtol=1e-5)

    print("KERNEL_OK")
</pallas_src>

<mosaic_0001>
module attributes {stable_mosaic.version = 11 : i64} {
  func.func @_pixelnorm_nc_hw_kernel(%arg0: i32, %arg1: i32, %arg2: memref<2x4x256xf32, #tpu.memory_space<vmem>>, %arg3: memref<2x4x256xf32, #tpu.memory_space<vmem>>) attributes {dimension_semantics = [#tpu.dimension_semantics<parallel>, #tpu.dimension_semantics<parallel>], iteration_bounds = array<i64: 1, 1>, scalar_prefetch = 0 : i64, scratch_operands = 0 : i64, tpu.core_type = #tpu.core_type<tc>, window_params = [{transform_indices = @transform_0, window_bounds = array<i64: 2, 4, 256>}, {transform_indices = @transform_1, window_bounds = array<i64: 2, 4, 256>}]} {
    %c0 = arith.constant 0 : index
    %c0_0 = arith.constant 0 : index
    %c0_1 = arith.constant 0 : index
    %0 = vector.load %arg2[%c0, %c0_0, %c0_1] : memref<2x4x256xf32, #tpu.memory_space<vmem>>, vector<2x4x256xf32>
    %1 = arith.mulf %0, %0 : vector<2x4x256xf32>
    %cst = arith.constant dense<0.000000e+00> : vector<2x256xf32>
    %2 = vector.multi_reduction <add>, %1, %cst [1] : vector<2x4x256xf32> to vector<2x256xf32>
    %3 = vector.shape_cast %2 : vector<2x256xf32> to vector<2x1x256xf32>
    %cst_2 = arith.constant 4.000000e+00 : f32
    %4 = vector.broadcast %cst_2 : f32 to vector<2x1x256xf32>
    %5 = arith.divf %3, %4 : vector<2x1x256xf32>
    %cst_3 = arith.constant 9.99999993E-9 : f32
    %6 = vector.broadcast %cst_3 : f32 to vector<2x1x256xf32>
    %7 = arith.addf %5, %6 : vector<2x1x256xf32>
    %8 = math.rsqrt %7 : vector<2x1x256xf32>
    %9 = vector.broadcast %8 : vector<2x1x256xf32> to vector<2x4x256xf32>
    %10 = arith.mulf %0, %9 : vector<2x4x256xf32>
    %c0_4 = arith.constant 0 : index
    %c0_5 = arith.constant 0 : index
    %c0_6 = arith.constant 0 : index
    %11 = vector.load %arg3[%c0_4, %c0_5, %c0_6] : memref<2x4x256xf32, #tpu.memory_space<vmem>>, vector<2x4x256xf32>
    tpu.vector_store %arg3[%c0_4, %c0_5, %c0_6], %10 {strides = array<i32>} : memref<2x4x256xf32, #tpu.memory_space<vmem>>, vector<2x4x256xf32>,
    return
  }
  func.func @transform_0(%arg0: i32, %arg1: i32) -> (i32, i32, i32) {
    %c0_i32 = arith.constant 0 : i32
    %c0_i32_0 = arith.constant 0 : i32
    return %arg0, %c0_i32, %arg1 : i32, i32, i32
  }
  func.func @transform_1(%arg0: i32, %arg1: i32) -> (i32, i32, i32) {
    %c0_i32 = arith.constant 0 : i32
    %c0_i32_0 = arith.constant 0 : i32
    return %arg0, %c0_i32, %arg1 : i32, i32, i32
  }
}

</mosaic_0001>

<llo_original>
// kernel: tpu_custom_call.1
$region0: #{tpu_custom_call.1}
  #allocation0 [shape = 'u32[]', space=smem, size = 0x4, offset = 0x4, fixed_abs, tag = 'smem constant byte address 0x4 - core index']
  #allocation1 [shape = 'u32[144,128]{1,0:T(1,128)}', space=vmem, size = 0x12000, scoped, tag = 'internal scratch']
  %s0 = inlined_call_operand.hbm [shape: f32[2,4,256], index: 0, kind: input, shape index: {}]
  %s1 = inlined_call_operand.hbm [shape: f32[2,4,256], index: 1, kind: output, shape index: {}]
  %s2 = sld [smem:[#allocation0]]
  $region18: #{tpu_custom_call.1} parent=0
    _
  %s4 = ssub.s32 1, %s2
  %s5 = scalar_select 0, %s4, %s2
  $region1: #{tpu_custom_call.1} parent=0
    #allocation2 [shape = 'u8[8192]{0}', space=vmem, size = 0x2000, scoped, tag = 'input window, operand 0, single buffered']
    #allocation3 [shape = 's32[1]{0}', space=sflag, size = 0x4, scoped, tag = 'scoped memory for tpu_custom_call.1']
    #allocation4 [shape = 's32[1]{0}', space=sflag, size = 0x4, scoped, tag = 'scoped memory for tpu_custom_call.1']
    #allocation5 [shape = 'u8[8192]{0}', space=vmem, size = 0x2000, scoped, tag = 'output window, operand 0, single buffered']
    %6 = vsyncpa [#allocation3], 0
    %7 = vsyncpa [#allocation4], 0
    // Predicated region
    $region2: #{tpu_custom_call.1} parent=1 // pred_check
      _
    $region3: #{tpu_custom_call.1} parent=1 // pred_check_branch
      %9 = sbr.rel (0) target = $region5
    $region4: #{tpu_custom_call.1} parent=1 // pred_region
      %s11 = ssub.s32 256, 256
      %12 = vsyncadd [#allocation3], %s11
      %s13 = sshll.u32 [#allocation2], 4
      %s14 = int_to_ptr.vmem [resolvable:$true] %s13
      %19 = dma.hbm_to_vmem [thread:$0]  %s0, 256, %s14, [#allocation3], 128, 128, 8
    $region5: #{tpu_custom_call.1} parent=1 // pred_fallthru
      _
    // Predicated region
    $region6: #{tpu_custom_call.1} parent=1 // pred_check
      _
    $region7: #{tpu_custom_call.1} parent=1 // pred_check_branch
      %21 = sbr.rel (0) target = $region9
    $region8: #{tpu_custom_call.1} parent=1 // pred_region
      %22 = dma.done [#allocation3], 256
    $region9: #{tpu_custom_call.1} parent=1 // pred_fallthru
      _
    %v23 = vld [vmem:[#allocation2] sm:$0xff]
    %v24 = vld [vmem:[#allocation2 + $0x8] sm:$0xff]
    %v25 = vmul.f32 %v23, %v23
    %v26 = vmul.f32 %v24, %v24
    %v29 = vcombine.high %v25, %v25
    %v30 = vcombine.high %v26, %v26
    %vm33 = vcmask 1043456
    %v34 = vsel %vm33, %v25, 0.0
    %v35 = vrot.slane %v34, 4
    %v36 = vadd.f32 %v34, %v35
    %v37 = vrot.slane %v36, 2
    %v38 = vadd.f32 %v36, %v37
    %v39 = vrot.slane %v38, 1
    %v40 = vadd.f32 %v38, %v39
    %v41 = vsel %vm33, %v29, 0.0
    %v42 = vrot.slane %v41, 4
    %v43 = vadd.f32 %v41, %v42
    %v44 = vrot.slane %v43, 2
    %v45 = vadd.f32 %v43, %v44
    %v46 = vrot.slane %v45, 1
    %v47 = vadd.f32 %v45, %v46
    %v48 = vsel %vm33, %v26, 0.0
    %v49 = vrot.slane %v48, 4
    %v50 = vadd.f32 %v48, %v49
    %v51 = vrot.slane %v50, 2
    %v52 = vadd.f32 %v50, %v51
    %v53 = vrot.slane %v52, 1
    %v54 = vadd.f32 %v52, %v53
    %v55 = vsel %vm33, %v30, 0.0
    %v56 = vrot.slane %v55, 4
    %v57 = vadd.f32 %v55, %v56
    %v58 = vrot.slane %v57, 2
    %v59 = vadd.f32 %v57, %v58
    %v60 = vrot.slane %v59, 1
    %v61 = vadd.f32 %v59, %v60
    %v62 = vrcp.pop 4.0
    %v63 = vmul.f32 %v40, %v62
    %v64 = vmul.f32 %v47, %v62
    %v65 = vmul.f32 %v54, %v62
    %v66 = vmul.f32 %v61, %v62
    %v67 = vadd.f32 %v63, 1e-08
    %v68 = vadd.f32 %v64, 1e-08
    %v69 = vadd.f32 %v65, 1e-08
    %v70 = vadd.f32 %v66, 1e-08
    %v71 = vrsqrt.pop %v67
    %v72 = vrsqrt.pop %v68
    %v73 = vrsqrt.pop %v69
    %v74 = vrsqrt.pop %v70
    %v79 = vcombine.low %v71, %v72
    %v80 = vcombine.low %v73, %v74
    %v83 = vmul.f32 %v23, %v79
    %v84 = vmul.f32 %v24, %v80
    %85 = vst [vmem:[#allocation5] sm:$0xff] %v83
    %86 = vst [vmem:[#allocation5 + $0x8] sm:$0xff] %v84
    // Predicated region
    $region10: #{tpu_custom_call.1} parent=1 // pred_check
      _
    $region11: #{tpu_custom_call.1} parent=1 // pred_check_branch
      %88 = sbr.rel (0) target = $region13
    $region12: #{tpu_custom_call.1} parent=1 // pred_region
      %s90 = ssub.s32 256, 256
      %91 = vsyncadd [#allocation4], %s90
      %s92 = sshll.u32 [#allocation5], 4
      %s93 = int_to_ptr.vmem [resolvable:$true] %s92
      %98 = dma.vmem_to_hbm [thread:$0]  %s93, 256, %s1, [#allocation4], 128, 128, 8
    $region13: #{tpu_custom_call.1} parent=1 // pred_fallthru
      _
    // Predicated region
    $region14: #{tpu_custom_call.1} parent=1 // pred_check
      _
    $region15: #{tpu_custom_call.1} parent=1 // pred_check_branch
      %100 = sbr.rel (0) target = $region17
    $region16: #{tpu_custom_call.1} parent=1 // pred_region
      %101 = dma.done [#allocation4], 256
    $region17: #{tpu_custom_call.1} parent=1 // pred_fallthru
      _
    %102 = vsyncpa [#allocation3], 1
    %103 = vsyncpa [#allocation4], 1

</llo_original>
